<compile_context>
chip_gen: v7x
topology: tpu7x:2x2x1
jax: 0.10.0
libtpu: 0.0.40
codegen_flags: <defaults>
</compile_context>

<pallas_src>
import functools
import math

import jax
import jax.numpy as jnp
from jax.experimental import pallas as pl
from jax.experimental.pallas import tpu as pltpu

_LANE = 128
_SUBLANE = 8
_TARGET_BLOCK_BYTES = 2 * 1024 * 1024    # ~2 MiB of payload per grid step
_VMEM_SLACK = 4 * 1024 * 1024


def _cdiv(a, b):
    return -(-a // b)


def _round_up(a, b):
    return _cdiv(a, b) * b


def _vmem_budget_bytes():
    """Usable scoped-VMEM budget (64 MiB physical on v7x, 128 MiB on v5e/v6e)."""
    try:
        cap = int(pltpu.get_tpu_info().vmem_capacity_bytes)
    except Exception:
        cap = 64 * 1024 * 1024           # conservative (v7x-sized) fallback
    return (cap * 3) // 4


def _block_budget_elems(itemsize):
    """(budget, target block elems, hard VMEM cap in elems)."""
    budget = _vmem_budget_bytes()
    # 2x double-buffered in + out blocks in the I/O dtype plus ~3 live f32
    # temporaries inside the kernel body.
    per_elem = 4 * itemsize + 3 * 4
    cap = max(1, (budget - _VMEM_SLACK) // per_elem)
    return budget, min(_TARGET_BLOCK_BYTES // itemsize, cap), cap


def _nr_reciprocal(s):
    # EUP approximate reciprocal + one Newton-Raphson step (~f32 accurate),
    # keeps the divide off the VPU slot.
    r = pl.reciprocal(s, approx=True)
    return r * (2.0 - s * r)


# --------------------------------------------------------------------------
# Kernels
# --------------------------------------------------------------------------
def _softmax_mid_kernel(inv_t_ref, x_ref, o_ref):
    """Softmax over axis 1 (sublanes) of a (TO, D, TI) block."""
    x = x_ref[...].astype(jnp.float32) * inv_t_ref[0, 0]
    m = jnp.max(x, axis=1, keepdims=True)
    e = jnp.exp(x - m)
    s = jnp.sum(e, axis=1, keepdims=True)
    o_ref[...] = (e * _nr_reciprocal(s)).astype(o_ref.dtype)


def _softmax_lane_kernel(inv_t_ref, x_ref, o_ref):
    """Softmax over the last axis (lanes) of a (TO, D) block (inner == 1 path)."""
    x = x_ref[...].astype(jnp.float32) * inv_t_ref[0, 0]
    m = jnp.max(x, axis=-1, keepdims=True)
    e = jnp.exp(x - m)
    s = jnp.sum(e, axis=-1, keepdims=True)
    o_ref[...] = (e * _nr_reciprocal(s)).astype(o_ref.dtype)


def _softmax_stats_kernel(d, td, inv_t_ref, x_ref, m_ref, s_ref):
    """Pass 1 of the large-D path: online running max/sum over D tiles."""
    k = pl.program_id(2)

    @pl.when(k == 0)
    def _():
        m_ref[...] = jnp.full_like(m_ref, -jnp.inf)
        s_ref[...] = jnp.zeros_like(s_ref)

    x = x_ref[...].astype(jnp.float32) * inv_t_ref[0, 0]
    # Mask rows of a ragged last D tile so they cannot contaminate the reduction.
    row = jax.lax.broadcasted_iota(jnp.int32, x.shape, 1) + k * td
    x = jnp.where(row < d, x, -jnp.inf)

    m_prev = m_ref[...]
    m_new = jnp.maximum(m_prev, jnp.max(x, axis=1, keepdims=True))
    s_ref[...] = s_ref[...] * jnp.exp(m_prev - m_new) + jnp.sum(
        jnp.exp(x - m_new), axis=1, keepdims=True)
    m_ref[...] = m_new


def _softmax_norm_kernel(inv_t_ref, x_ref, m_ref, s_ref, o_ref):
    """Pass 2 of the large-D path: e^(x/T - m) / s."""
    x = x_ref[...].astype(jnp.float32) * inv_t_ref[0, 0]
    e = jnp.exp(x - m_ref[...])
    o_ref[...] = (e * _nr_reciprocal(s_ref[...])).astype(o_ref.dtype)


# --------------------------------------------------------------------------
# Wrappers
# --------------------------------------------------------------------------
def _softmax_last_dim(x2, inv_t):
    """Softmax over the last axis of a 2-D (outer, d) array (inner == 1)."""
    outer, d = x2.shape
    itemsize = jnp.dtype(x2.dtype).itemsize
    budget, block_elems, _ = _block_budget_elems(itemsize)
    d_pad = _round_up(d, _LANE)
    # TODO(synk): a single row too large for VMEM (d > ~1.5M f32) would need a
    # lane-tiled online-softmax; SoftmaxT inputs never reach that.
    rows_cap = max(1, block_elems // d_pad)
    if outer < _SUBLANE:
        to = outer
    else:
        to = max(_SUBLANE, (min(rows_cap, outer) // _SUBLANE) * _SUBLANE)
        if _cdiv(outer, to) == 1 and outer >= 2 * _SUBLANE:
            to = _round_up(_cdiv(outer, 2), _SUBLANE)   # keep both v7x TCs busy
    grid = (_cdiv(outer, to),)

    blk = to * d_pad
    vmem_limit = int(min(budget,
                         max(4 * blk * itemsize + 3 * blk * 4 + (2 << 20),
                             16 << 20)))
    elems = outer * d
    cost = pl.CostEstimate(flops=6 * elems, transcendentals=elems,
                           bytes_accessed=2 * elems * itemsize)

    return pl.pallas_call(
        _softmax_lane_kernel,
        out_shape=jax.ShapeDtypeStruct((outer, d), x2.dtype),
        grid=grid,
        in_specs=[
            pl.BlockSpec(memory_space=pltpu.MemorySpace.SMEM),
            pl.BlockSpec((to, d), lambda i: (i, 0)),
        ],
        out_specs=pl.BlockSpec((to, d), lambda i: (i, 0)),
        compiler_params=pltpu.CompilerParams(
            dimension_semantics=("parallel",),
            vmem_limit_bytes=vmem_limit),
        cost_estimate=cost,
    )(inv_t, x2)


def _softmax_two_pass(x3, inv_t):
    """Large-D fallback: D tiled on an 'arbitrary' axis with an online
    running max/sum pass (accumulator outputs), then a normalize pass."""
    outer, d, inner = x3.shape
    itemsize = jnp.dtype(x3.dtype).itemsize
    budget, block_elems, _ = _block_budget_elems(itemsize)

    ti = inner if inner <= 1024 else 1024            # full inner, or a 128-multiple
    ti_pad = _round_up(ti, _LANE)
    td = max(_SUBLANE, ((block_elems // ti_pad) // _SUBLANE) * _SUBLANE)
    td = min(td, _round_up(d, _SUBLANE))
    grid = (outer, _cdiv(inner, ti), _cdiv(d, td))

    blk = td * ti_pad
    vmem1 = int(min(budget, max(2 * blk * itemsize + 3 * blk * 4 + (4 << 20), 16 << 20)))
    vmem2 = int(min(budget, max(4 * blk * itemsize + 3 * blk * 4 + (4 << 20), 16 << 20)))

    m, s = pl.pallas_call(
        functools.partial(_softmax_stats_kernel, d, td),
        out_shape=(jax.ShapeDtypeStruct((outer, 1, inner), jnp.float32),
                   jax.ShapeDtypeStruct((outer, 1, inner), jnp.float32)),
        grid=grid,
        in_specs=[
            pl.BlockSpec(memory_space=pltpu.MemorySpace.SMEM),
            pl.BlockSpec((1, td, ti), lambda n, t, k: (n, k, t)),
        ],
        out_specs=(pl.BlockSpec((1, 1, ti), lambda n, t, k: (n, 0, t)),
                   pl.BlockSpec((1, 1, ti), lambda n, t, k: (n, 0, t))),
        compiler_params=pltpu.CompilerParams(
            dimension_semantics=("parallel", "parallel", "arbitrary"),
            vmem_limit_bytes=vmem1),
    )(inv_t, x3)

    return pl.pallas_call(
        _softmax_norm_kernel,
        out_shape=jax.ShapeDtypeStruct((outer, d, inner), x3.dtype),
        grid=grid,
        in_specs=[
            pl.BlockSpec(memory_space=pltpu.MemorySpace.SMEM),
            pl.BlockSpec((1, td, ti), lambda n, t, k: (n, k, t)),
            pl.BlockSpec((1, 1, ti), lambda n, t, k: (n, 0, t)),
            pl.BlockSpec((1, 1, ti), lambda n, t, k: (n, 0, t)),
        ],
        out_specs=pl.BlockSpec((1, td, ti), lambda n, t, k: (n, k, t)),
        compiler_params=pltpu.CompilerParams(
            dimension_semantics=("parallel", "parallel", "parallel"),
            vmem_limit_bytes=vmem2),
    )(inv_t, x3, m, s)


def softmax_t(x, temperature, dim=1, *, force_two_pass=False):
    """Pallas-TPU equivalent of torch.nn.functional.softmax(x / temperature, dim)."""
    dim = dim % x.ndim
    shape = x.shape
    outer = int(math.prod(shape[:dim]))
    d = int(shape[dim])
    inner = int(math.prod(shape[dim + 1:]))

    # 1/temperature as a runtime SMEM scalar (works for traced temperatures).
    inv_t = (jnp.asarray(1.0, jnp.float32)
             / jnp.asarray(temperature, jnp.float32)).reshape(1, 1)
    itemsize = jnp.dtype(x.dtype).itemsize

    # Fast path: softmax over the last axis -> D on the lane axis.
    if inner == 1 and not force_two_pass:
        return _softmax_last_dim(x.reshape(outer, d), inv_t).reshape(shape)

    x3 = x.reshape(outer, d, inner)
    budget, block_elems, vmem_cap_elems = _block_budget_elems(itemsize)

    sub = max(_SUBLANE, 32 // itemsize)              # sublane packing granularity
    d_pad = _round_up(d, sub)

    # Large-D guard: even a minimal (1, D, 128) block would overflow scoped VMEM
    # (relevant on v7x's 64 MiB) -> D-tiled two-pass online softmax.
    if force_two_pass or d_pad * _LANE > vmem_cap_elems:
        return _softmax_two_pass(x3, inv_t).reshape(shape)

    # Block sizing: lane-dense inner tile first, then stack outer rows until
    # ~1-4 MiB per block (amortizes the ~0.35 us per grid-step overhead).
    lanes_cap = max(1, block_elems // d_pad)
    if inner <= lanes_cap:
        ti = inner                                   # full inner (non-128 OK)
    else:
        ti = max(_LANE, (lanes_cap // _LANE) * _LANE)  # ragged last tile is masked
    ti_pad = _round_up(ti, _LANE)
    to = max(1, min(outer, block_elems // (d_pad * ti_pad)))
    if _cdiv(outer, to) == 1 and _cdiv(inner, ti) == 1 and outer >= 2:
        to = _cdiv(outer, 2)                         # keep both v7x TCs busy

    grid = (_cdiv(outer, to), _cdiv(inner, ti))

    blk = to * d_pad * ti_pad
    vmem_limit = int(min(budget,
                         max(4 * blk * itemsize + 3 * blk * 4 + (2 << 20),
                             16 << 20)))
    elems = outer * d * inner
    cost = pl.CostEstimate(flops=6 * elems, transcendentals=elems,
                           bytes_accessed=2 * elems * itemsize)

    out3 = pl.pallas_call(
        _softmax_mid_kernel,
        out_shape=jax.ShapeDtypeStruct((outer, d, inner), x.dtype),
        grid=grid,
        in_specs=[
            pl.BlockSpec(memory_space=pltpu.MemorySpace.SMEM),
            pl.BlockSpec((to, d, ti), lambda n, t: (n, 0, t)),
        ],
        out_specs=pl.BlockSpec((to, d, ti), lambda n, t: (n, 0, t)),
        compiler_params=pltpu.CompilerParams(
            dimension_semantics=("parallel", "parallel"),
            vmem_limit_bytes=vmem_limit),
        cost_estimate=cost,
    )(inv_t, x3)
    return out3.reshape(shape)


if __name__ == "__main__":
    temperature = 2.0

    # 1) Typical SoftmaxT use: NCHW channel softmax (main blocked path).
    x = jax.random.normal(jax.random.PRNGKey(0), (2, 4, 16, 16), dtype=jnp.float32)
    out = jax.block_until_ready(softmax_t(x, temperature, dim=1))
    ref = jax.nn.softmax(x / temperature, axis=1)
    assert out.shape == x.shape
    assert jnp.allclose(out, ref, atol=1e-5, rtol=1e-5)

    # 2) Awkward spatial size (7x7 -> inner=49): no pad/slice, ragged block.
    x2 = jax.random.normal(jax.random.PRNGKey(1), (2, 4, 7, 7), dtype=jnp.float32)
    out2 = jax.block_until_ready(softmax_t(x2, temperature, dim=1))
    ref2 = jax.nn.softmax(x2 / temperature, axis=1)
    assert jnp.allclose(out2, ref2, atol=1e-5, rtol=1e-5)

    # 3) Softmax over the last axis (inner == 1): lane-reduce fast path.
    x3 = jax.random.normal(jax.random.PRNGKey(2), (16, 1000), dtype=jnp.float32)
    out3 = jax.block_until_ready(softmax_t(x3, temperature, dim=-1))
    ref3 = jax.nn.softmax(x3 / temperature, axis=-1)
    assert jnp.allclose(out3, ref3, atol=1e-5, rtol=1e-5)

    # 4) Multi-tile inner with a ragged last inner tile.
    x4 = jax.random.normal(jax.random.PRNGKey(3), (2, 512, 1500), dtype=jnp.float32)
    out4 = jax.block_until_ready(softmax_t(x4, temperature, dim=1))
    ref4 = jax.nn.softmax(x4 / temperature, axis=1)
    assert jnp.allclose(out4, ref4, atol=1e-5, rtol=1e-5)

    # 5) Large-D two-pass (online max/sum) fallback, forced at a small shape.
    x5 = jax.random.normal(jax.random.PRNGKey(4), (2, 1024, 32, 32), dtype=jnp.float32)
    out5 = jax.block_until_ready(softmax_t(x5, temperature, dim=1, force_two_pass=True))
    ref5 = jax.nn.softmax(x5 / temperature, axis=1)
    assert jnp.allclose(out5, ref5, atol=1e-5, rtol=1e-5)

    # 6) bf16 I/O (f32 accumulation inside the kernel).
    x6 = jax.random.normal(jax.random.PRNGKey(5), (2, 8, 16, 16)).astype(jnp.bfloat16)
    out6 = jax.block_until_ready(softmax_t(x6, temperature, dim=1))
    ref6 = jax.nn.softmax(x6.astype(jnp.float32) / temperature, axis=1)
    assert jnp.allclose(out6.astype(jnp.float32), ref6, atol=1e-2, rtol=1e-2)

    print("KERNEL_OK")
</pallas_src>

<mosaic_0001>
module attributes {stable_mosaic.version = 11 : i64} {
  func.func @_softmax_mid_kernel(%arg0: i32, %arg1: i32, %arg2: memref<1x1xf32, #tpu.memory_space<smem>>, %arg3: memref<1x4x256xf32, #tpu.memory_space<vmem>>, %arg4: memref<1x4x256xf32, #tpu.memory_space<vmem>>) attributes {dimension_semantics = [#tpu.dimension_semantics<parallel>, #tpu.dimension_semantics<parallel>], iteration_bounds = array<i64: 2, 1>, scalar_prefetch = 0 : i64, scratch_operands = 0 : i64, tpu.core_type = #tpu.core_type<tc>, window_params = [{transform_indices = @transform_0, window_bounds = array<i64: 1, 1>}, {transform_indices = @transform_1, window_bounds = array<i64: 1, 4, 256>}, {transform_indices = @transform_2, window_bounds = array<i64: 1, 4, 256>}]} {
    %c0 = arith.constant 0 : index
    %c0_0 = arith.constant 0 : index
    %c0_1 = arith.constant 0 : index
    %0 = vector.load %arg3[%c0, %c0_0, %c0_1] : memref<1x4x256xf32, #tpu.memory_space<vmem>>, vector<1x4x256xf32>
    %c0_2 = arith.constant 0 : index
    %c0_3 = arith.constant 0 : index
    %1 = memref.load %arg2[%c0_2, %c0_3] : memref<1x1xf32, #tpu.memory_space<smem>>
    %2 = vector.broadcast %1 : f32 to vector<1x4x256xf32>
    %3 = arith.mulf %0, %2 : vector<1x4x256xf32>
    %cst = arith.constant dense<0xFF800000> : vector<1x256xf32>
    %4 = vector.multi_reduction <maximumf>, %3, %cst [1] : vector<1x4x256xf32> to vector<1x256xf32>
    %5 = vector.shape_cast %4 : vector<1x256xf32> to vector<1x1x256xf32>
    %6 = vector.broadcast %5 : vector<1x1x256xf32> to vector<1x4x256xf32>
    %7 = arith.subf %3, %6 : vector<1x4x256xf32>
    %8 = math.exp %7 : vector<1x4x256xf32>
    %cst_4 = arith.constant dense<0.000000e+00> : vector<1x256xf32>
    %9 = vector.multi_reduction <add>, %8, %cst_4 [1] : vector<1x4x256xf32> to vector<1x256xf32>
    %10 = vector.shape_cast %9 : vector<1x256xf32> to vector<1x1x256xf32>
    %11 = tpu.reciprocal %10 {approx = true} : vector<1x1x256xf32> -> vector<1x1x256xf32>
    %12 = arith.mulf %10, %11 : vector<1x1x256xf32>
    %cst_5 = arith.constant 2.000000e+00 : f32
    %13 = vector.broadcast %cst_5 : f32 to vector<1x1x256xf32>
    %14 = arith.subf %13, %12 : vector<1x1x256xf32>
    %15 = arith.mulf %11, %14 : vector<1x1x256xf32>
    %16 = vector.broadcast %15 : vector<1x1x256xf32> to vector<1x4x256xf32>
    %17 = arith.mulf %8, %16 : vector<1x4x256xf32>
    %c0_6 = arith.constant 0 : index
    %c0_7 = arith.constant 0 : index
    %c0_8 = arith.constant 0 : index
    %18 = vector.load %arg4[%c0_6, %c0_7, %c0_8] : memref<1x4x256xf32, #tpu.memory_space<vmem>>, vector<1x4x256xf32>
    tpu.vector_store %arg4[%c0_6, %c0_7, %c0_8], %17 {strides = array<i32>} : memref<1x4x256xf32, #tpu.memory_space<vmem>>, vector<1x4x256xf32>,
    return
  }
  func.func @transform_0(%arg0: i32, %arg1: i32) -> (i32, i32) {
    %c0_i32 = arith.constant 0 : i32
    %c0_i32_0 = arith.constant 0 : i32
    %c0_i32_1 = arith.constant 0 : i32
    return %c0_i32, %c0_i32_0 : i32, i32
  }
  func.func @transform_1(%arg0: i32, %arg1: i32) -> (i32, i32, i32) {
    %c0_i32 = arith.constant 0 : i32
    %c0_i32_0 = arith.constant 0 : i32
    return %arg0, %c0_i32, %arg1 : i32, i32, i32
  }
  func.func @transform_2(%arg0: i32, %arg1: i32) -> (i32, i32, i32) {
    %c0_i32 = arith.constant 0 : i32
    %c0_i32_0 = arith.constant 0 : i32
    return %arg0, %c0_i32, %arg1 : i32, i32, i32
  }
}

</mosaic_0001>

<llo_original>
// kernel: tpu_custom_call.1
$region0: #{tpu_custom_call.1}
  #allocation0 [shape = 'u32[]', space=smem, size = 0x4, offset = 0x4, fixed_abs, tag = 'smem constant byte address 0x4 - core index']
  #allocation1 [shape = 'u32[144,128]{1,0:T(1,128)}', space=vmem, size = 0x12000, scoped, tag = 'internal scratch']
  #allocation2 [shape = 'f32[1,1]{1,0:T(1,128)S(6)}', space=smem, size = 0x200, scoped, tag = 'scoped memory for tpu_custom_call.1']
  %s0 = inlined_call_operand.<no memory space> [shape: f32[1,1], index: 0, kind: input, shape index: {}]
  %s1 = inlined_call_operand.hbm [shape: f32[2,4,256], index: 1, kind: input, shape index: {}]
  %s2 = inlined_call_operand.hbm [shape: f32[2,4,256], index: 2, kind: output, shape index: {}]
  %s3 = sld [smem:[#allocation0]]
  $region45: #{tpu_custom_call.1} parent=0
    _
  %s5 = ssub.s32 1, %s3
  %s6 = scalar_select 0, %s5, %s3
  %7 = sst [smem:[#allocation2]] %s0
  $region1: #{tpu_custom_call.1} parent=0
    #allocation3 [shape = 'u8[8192]{0}', space=vmem, size = 0x2000, scoped, tag = 'input window, operand 1']
    #allocation4 [shape = 's32[2]{0}', space=sflag, size = 0x8, scoped, tag = 'scoped memory for tpu_custom_call.1']
    #allocation5 [shape = 's32[2]{0}', space=sflag, size = 0x8, scoped, tag = 'scoped memory for tpu_custom_call.1']
    #allocation6 [shape = 'u8[8192]{0}', space=vmem, size = 0x2000, scoped, tag = 'output window, operand 0']
    %8 = vsyncpa [#allocation4], 0
    %s9 = scalar_lea.sflag [#allocation4], 1
    %10 = vsyncpa %s9, 0
    %11 = vsyncpa [#allocation5], 0
    %s12 = scalar_lea.sflag [#allocation5], 1
    %13 = vsyncpa %s12, 0
    loop: start=0, step=1, limit=4
    $region2: #{tpu_custom_call.1} parent=1 // loop_pre_header
      _
    $region3: #{tpu_custom_call.1} parent=1 // loop_header
      %s15 = sphi 0, %s19
      %p16 = scmp.ge.s32.totalorder %s15, 4
      %s22 = sphi 0, %s34
      %s23 = sphi 0, %s30
      %s24 = sphi 0, %s22
      %s25 = sphi 0, %s23
      %s26 = sphi 0, %s24
      %s27 = sphi 0, %s25
      %s35 = sphi 0, %s35
      %s37 = sphi 0, %s35
      %s38 = sphi 0, %s37
      %s52 = sphi 0, %s38
      %s60 = sphi 0, %s62
      %s63 = sphi 0, %s60
      %s64 = sphi 0, %s63
      %s80 = sphi 0, %s64
      %s88 = sphi 0, %s90
      %s91 = sphi 0, %s88
      %s92 = sphi 0, %s91
      %s108 = sphi 0, %s92
    $region4: #{tpu_custom_call.1} parent=1 // loop_header_branch
      %18 = sbr.rel (%p16) target = $region8
    $region5: #{tpu_custom_call.1} parent=1 // loop_body
      %s20 = ssub.s32 %s15, 1
      %s21 = ssub.s32 %s15, 2
      %s28 = sadd.s32 1, %s23
      %p29 = scmp.ge.s32.totalorder %s28, 1
      %s30 = scalar_select %p29, 0, %s28
      %s31 = sadd.s32 1, %s22
      %s32 = scalar_select %p29, %s31, %s22
      %p33 = scmp.ge.s32.totalorder %s32, 2
      %s34 = scalar_select %p33, 0, %s32
      %s36 = sadd.s32 %s35, 1
      %p39 = scmp.eq.s32.totalorder %s15, 1
      %p40 = scmp.ne.s32.totalorder %s35, %s37
      %p41 = scmp.eq.s32.totalorder %s15, 0
      %p42 = por %p40, %p41
      %p43 = scmp.ne.s32.totalorder %s35, %s37
      %p44 = scmp.eq.s32.totalorder %s20, 1
      %p45 = por %p43, %p44
      %p46 = scmp.ne.s32.totalorder %s37, %s38
      %p47 = scmp.eq.s32.totalorder %s20, 0
      %p48 = por %p46, %p47
      %p49 = scmp.ne.s32.totalorder %s37, %s38
      %p50 = scmp.eq.s32.totalorder %s21, 1
      %p51 = por %p49, %p50
      %p53 = scmp.ne.s32.totalorder %s38, %s52
      %p54 = scmp.eq.s32.totalorder %s21, 0
      %p55 = por %p53, %p54
      %s56 = ssub.s32 %s22, %s34
      %s57 = ssub.s32 %s23, %s30
      %s58 = sor.u32 %s56, %s57
      %p59 = scmp.eq.s32.totalorder %s58, 0
      %s61 = sadd.s32 %s60, 1
      %s62 = scalar_select %p59, %s60, %s61
      %p65 = pneg %p59
      %p66 = scmp.eq.s32.totalorder %s15, 1
      %p67 = por %p65, %p66
      %p68 = scmp.ne.s32.totalorder %s60, %s63
      %p69 = scmp.eq.s32.totalorder %s15, 0
      %p70 = por %p68, %p69
      %p71 = scmp.ne.s32.totalorder %s60, %s63
      %p72 = scmp.eq.s32.totalorder %s20, 1
      %p73 = por %p71, %p72
      %p74 = scmp.ne.s32.totalorder %s63, %s64
      %p75 = scmp.eq.s32.totalorder %s20, 0
      %p76 = por %p74, %p75
      %p77 = scmp.ne.s32.totalorder %s63, %s64
      %p78 = scmp.eq.s32.totalorder %s21, 1
      %p79 = por %p77, %p78
      %p81 = scmp.ne.s32.totalorder %s64, %s80
      %p82 = scmp.eq.s32.totalorder %s21, 0
      %p83 = por %p81, %p82
      %s84 = ssub.s32 %s22, %s34
      %s85 = ssub.s32 %s23, %s30
      %s86 = sor.u32 %s84, %s85
      %p87 = scmp.eq.s32.totalorder %s86, 0
      %s89 = sadd.s32 %s88, 1
      %s90 = scalar_select %p87, %s88, %s89
      %p93 = pneg %p87
      %p94 = scmp.eq.s32.totalorder %s15, 1
      %p95 = por %p93, %p94
      %p96 = scmp.ne.s32.totalorder %s88, %s91
      %p97 = scmp.eq.s32.totalorder %s15, 0
      %p98 = por %p96, %p97
      %p99 = scmp.ne.s32.totalorder %s88, %s91
      %p100 = scmp.eq.s32.totalorder %s20, 1
      %p101 = por %p99, %p100
      %p102 = scmp.ne.s32.totalorder %s91, %s92
      %p103 = scmp.eq.s32.totalorder %s20, 0
      %p104 = por %p102, %p103
      %p105 = scmp.ne.s32.totalorder %s91, %s92
      %p106 = scmp.eq.s32.totalorder %s21, 1
      %p107 = por %p105, %p106
      %p109 = scmp.ne.s32.totalorder %s92, %s108
      %p110 = scmp.eq.s32.totalorder %s21, 0
      %p111 = por %p109, %p110
      %p112 = scmp.le.s32.totalorder 1, %s15
      %p113 = scmp.lt.s32.totalorder %s15, 3
      %p114 = pnand %p112, %p113
      %p115 = pneg %p114
      // Predicated region
      $region9: #{tpu_custom_call.1} parent=5 // pred_check
        _
      $region10: #{tpu_custom_call.1} parent=5 // pred_check_branch
        %117 = sbr.rel (%p114) target = $region12
      $region11: #{tpu_custom_call.1} parent=5 // pred_region
        %s118 = ssub.s32 %s15, 1
        // Predicated region
        $region13: #{tpu_custom_call.1} parent=11 // pred_check
          %p119 = pneg %p48
        $region14: #{tpu_custom_call.1} parent=11 // pred_check_branch
          %121 = sbr.rel (%p119) target = $region16
        $region15: #{tpu_custom_call.1} parent=11 // pred_region
          _
        $region16: #{tpu_custom_call.1} parent=11 // pred_fallthru
          _
      $region12: #{tpu_custom_call.1} parent=5 // pred_fallthru
        _
      %p122 = scmp.lt.s32.totalorder %s15, 2
      // Predicated region
      $region17: #{tpu_custom_call.1} parent=5 // pred_check
        %p123 = pneg %p122
      $region18: #{tpu_custom_call.1} parent=5 // pred_check_branch
        %125 = sbr.rel (%p123) target = $region20
      $region19: #{tpu_custom_call.1} parent=5 // pred_region
        // Predicated region
        $region21: #{tpu_custom_call.1} parent=19 // pred_check
          %p126 = pneg %p70
        $region22: #{tpu_custom_call.1} parent=19 // pred_check_branch
          %128 = sbr.rel (%p126) target = $region24
        $region23: #{tpu_custom_call.1} parent=19 // pred_region
          %s129 = sand.u32 %s60, 1
          %s130 = scalar_lea.sflag [#allocation4], %s129
          %s131 = sand.u32 %s60, 1
          %s132 = smul.addr %s131, 8
          %s133 = scalar_lea.vmem [#allocation3], %s132
          %s134 = smul.u32 2, %s23
          %s136 = ssub.s32 128, 128
          %137 = vsyncadd %s130, %s136
          %s138 = smul.addr %s22, 2
          %s139 = sadd.s32 %s134, %s138
          %s140 = smul.addr %s139, 64
          %s141 = scalar_lea.hbm %s1, %s140
          %s143 = sshll.u32 %s133, 4
          %s144 = int_to_ptr.vmem [resolvable:$true] %s143
          %146 = dma.hbm_to_vmem [thread:$0]  %s141, 128, %s144, %s130
        $region24: #{tpu_custom_call.1} parent=19 // pred_fallthru
          _
      $region20: #{tpu_custom_call.1} parent=5 // pred_fallthru
        _
      %p147 = scmp.le.s32.totalorder 1, %s15
      %p148 = scmp.lt.s32.totalorder %s15, 3
      %p149 = pnand %p147, %p148
      %p150 = pneg %p149
      // Predicated region
      $region25: #{tpu_custom_call.1} parent=5 // pred_check
        _
      $region26: #{tpu_custom_call.1} parent=5 // pred_check_branch
        %152 = sbr.rel (%p149) target = $region28
      $region27: #{tpu_custom_call.1} parent=5 // pred_region
        %s153 = ssub.s32 %s15, 1
        %s154 = sand.u32 %s63, 1
        %s155 = scalar_lea.sflag [#allocation4], %s154
        %s156 = sand.u32 %s63, 1
        %s157 = smul.addr %s156, 8
        %s158 = scalar_lea.vmem [#allocation3], %s157
        // Predicated region
        $region29: #{tpu_custom_call.1} parent=27 // pred_check
          %p159 = pneg %p76
        $region30: #{tpu_custom_call.1} parent=27 // pred_check_branch
          %161 = sbr.rel (%p159) target = $region32
        $region31: #{tpu_custom_call.1} parent=27 // pred_region
          %162 = dma.done %s155, 128
        $region32: #{tpu_custom_call.1} parent=27 // pred_fallthru
          _
        %p163 = pneg %p48
        %p164 = pneg %p45
        %s165 = sand.u32 %s63, 1
        %s166 = scalar_lea.sflag [#allocation4], %s165
        %s167 = sand.u32 %s63, 1
        %s168 = smul.addr %s167, 8
        %s169 = scalar_lea.vmem [#allocation3], %s168
        %p170 = pneg %p76
        %p171 = pneg %p73
        %p172 = pneg %p104
        %p173 = pneg %p101
        %s174 = sand.u32 %s91, 1
        %s175 = scalar_lea.sflag [#allocation5], %s174
        %s176 = sand.u32 %s91, 1
        %s177 = smul.addr %s176, 8
        %s178 = scalar_lea.vmem [#allocation6], %s177
        %s179 = smul.u32 2, %s25
        %s180 = smul.u32 2, %s25
        %v181 = vld [vmem:[%s158] sm:$0xff]
        %s182 = sld [smem:[#allocation2]]
        %v183 = vstv %s182
        %v184 = vmul.f32 %v181, %v183
        %v186 = vcombine.high %v184, %v184
        %vm188 = vcmask 1043456
        %v189 = vsel %vm188, %v184, -inf
        %v190 = vrot.slane %v189, 4
        %v191 = vmax.f32 %v189, %v190
        %v192 = vrot.slane %v191, 2
        %v193 = vmax.f32 %v191, %v192
        %v194 = vrot.slane %v193, 1
        %v195 = vmax.f32 %v193, %v194
        %v196 = vsel %vm188, %v186, -inf
        %v197 = vrot.slane %v196, 4
        %v198 = vmax.f32 %v196, %v197
        %v199 = vrot.slane %v198, 2
        %v200 = vmax.f32 %v198, %v199
        %v201 = vrot.slane %v200, 1
        %v202 = vmax.f32 %v200, %v201
        %v205 = vcombine.low %v195, %v202
        %v207 = vsub.f32 %v184, %v205
        %v208 = vmul.f32 %v207, 1.442695
        %v209 = vpow.pop %v208
        %v211 = vcombine.high %v209, %v209
        %v213 = vsel %vm188, %v209, 0.0
        %v214 = vrot.slane %v213, 4
        %v215 = vadd.f32 %v213, %v214
        %v216 = vrot.slane %v215, 2
        %v217 = vadd.f32 %v215, %v216
        %v218 = vrot.slane %v217, 1
        %v219 = vadd.f32 %v217, %v218
        %v220 = vsel %vm188, %v211, 0.0
        %v221 = vrot.slane %v220, 4
        %v222 = vadd.f32 %v220, %v221
        %v223 = vrot.slane %v222, 2
        %v224 = vadd.f32 %v222, %v223
        %v225 = vrot.slane %v224, 1
        %v226 = vadd.f32 %v224, %v225
        %v227 = vrcp.pop %v219
        %v228 = vrcp.pop %v226
        %v229 = vmul.f32 %v219, %v227
        %v230 = vmul.f32 %v226, %v228
        %v231 = vsub.f32 2.0, %v229
        %v232 = vsub.f32 2.0, %v230
        %v233 = vmul.f32 %v227, %v231
        %v234 = vmul.f32 %v228, %v232
        %v237 = vcombine.low %v233, %v234
        %v239 = vmul.f32 %v209, %v237
        %240 = vst [vmem:[%s178] sm:$0xff] %v239
        %s241 = sand.u32 %s91, 1
        %s242 = scalar_lea.sflag [#allocation5], %s241
        %s243 = sand.u32 %s91, 1
        %s244 = smul.addr %s243, 8
        %s245 = scalar_lea.vmem [#allocation6], %s244
        // Predicated region
        $region33: #{tpu_custom_call.1} parent=27 // pred_check
          %p246 = pneg %p101
        $region34: #{tpu_custom_call.1} parent=27 // pred_check_branch
          %248 = sbr.rel (%p246) target = $region36
        $region35: #{tpu_custom_call.1} parent=27 // pred_region
          %s249 = smul.u32 2, %s25
          %s251 = ssub.s32 128, 128
          %252 = vsyncadd %s242, %s251
          %s253 = smul.addr %s24, 2
          %s254 = sadd.s32 %s249, %s253
          %s255 = smul.addr %s254, 64
          %s256 = scalar_lea.hbm %s2, %s255
          %s258 = sshll.u32 %s245, 4
          %s259 = int_to_ptr.vmem [resolvable:$true] %s258
          %261 = dma.vmem_to_hbm [thread:$0]  %s259, 128, %s256, %s242
        $region36: #{tpu_custom_call.1} parent=27 // pred_fallthru
          _
      $region28: #{tpu_custom_call.1} parent=5 // pred_fallthru
        _
      %p262 = scmp.le.s32.totalorder 2, %s15
      // Predicated region
      $region37: #{tpu_custom_call.1} parent=5 // pred_check
        %p263 = pneg %p262
      $region38: #{tpu_custom_call.1} parent=5 // pred_check_branch
        %265 = sbr.rel (%p263) target = $region40
      $region39: #{tpu_custom_call.1} parent=5 // pred_region
        %s266 = ssub.s32 %s15, 2
        // Predicated region
        $region41: #{tpu_custom_call.1} parent=39 // pred_check
          %p267 = pneg %p107
        $region42: #{tpu_custom_call.1} parent=39 // pred_check_branch
          %269 = sbr.rel (%p267) target = $region44
        $region43: #{tpu_custom_call.1} parent=39 // pred_region
          %s270 = sand.u32 %s92, 1
          %s271 = scalar_lea.sflag [#allocation5], %s270
          %s272 = sand.u32 %s92, 1
          %s273 = smul.addr %s272, 8
          %s274 = scalar_lea.vmem [#allocation6], %s273
          %275 = dma.done %s271, 128
        $region44: #{tpu_custom_call.1} parent=39 // pred_fallthru
          _
      $region40: #{tpu_custom_call.1} parent=5 // pred_fallthru
        _
    $region6: #{tpu_custom_call.1} parent=1 // loop_footer
      %s19 = sadd.s32 1, %s15
    $region7: #{tpu_custom_call.1} parent=1 // loop_footer_branch
      %14 = sbr.rel target = $region3
    $region8: #{tpu_custom_call.1} parent=1 // loop_exit
      _
    %276 = vsyncpa [#allocation4], 1
    %s277 = scalar_lea.sflag [#allocation4], 1
    %278 = vsyncpa %s277, 1
    %279 = vsyncpa [#allocation5], 1
    %s280 = scalar_lea.sflag [#allocation5], 1
    %281 = vsyncpa %s280, 1

</llo_original>
